<compile_context>
chip_gen: v5e
topology: v5e:2x2
jax: 0.10.0
libtpu: 0.0.40
codegen_flags: <defaults>
</compile_context>

<pallas_src>
import jax
import jax.numpy as jnp
from jax.experimental import pallas as pl
from jax.experimental.pallas import tpu as pltpu


# ---------------------------------------------------------------------------
# Fused kernel: 3x3/s2 conv (in-kernel im2col over kw) + folded BN + ReLU
#   r{0,1,2}_ref : (1, TH, Wph, 2*Cin)  row-phase view for kh = 0/1/2,
#                                       column pairs packed into the last dim
#   wa_ref       : (3, 2*Cin, Cout)     BN-scaled weights, taps (kh, kw in {0,1})
#   wb_ref       : (3,   Cin, Cout)     BN-scaled weights, taps (kh, kw = 2)
#   shift_ref    : (1, Cout)            beta - mean * scale
#   o_ref        : (1, TH*Wo, Cout)
# ---------------------------------------------------------------------------
def _conv_bn_relu_kernel(r0_ref, r1_ref, r2_ref, wa_ref, wb_ref, shift_ref,
                         o_ref):
    th = r0_ref.shape[1]
    wph = r0_ref.shape[2]
    two_cin = r0_ref.shape[3]
    cin = two_cin // 2
    cout = shift_ref.shape[1]
    wo = wph - 1

    acc = jnp.zeros((th * wo, cout), dtype=jnp.float32)
    for k, r_ref in enumerate((r0_ref, r1_ref, r2_ref)):
        rows = r_ref[0]                                    # (TH, Wph, 2*Cin)
        # taps (kh=k, kw=0) and (kh=k, kw=1): column pair `ow`, both halves
        lhs_a = rows[:, 0:wo, :].reshape(th * wo, two_cin)
        # tap (kh=k, kw=2): column pair `ow+1`, first half only
        lhs_b = rows[:, 1:wph, 0:cin].reshape(th * wo, cin)
        acc = acc + jnp.dot(lhs_a, wa_ref[k],
                            preferred_element_type=jnp.float32)
        acc = acc + jnp.dot(lhs_b, wb_ref[k],
                            preferred_element_type=jnp.float32)

    y = jnp.maximum(acc + shift_ref[...], 0.0)             # BN shift + ReLU (f32)
    o_ref[0] = y.astype(o_ref.dtype)


# ---------------------------------------------------------------------------
# Wrapper: NCHW in / NCHW out, layout glue only (no K*K im2col in HBM)
# ---------------------------------------------------------------------------
def simple_stem_in(x_nchw, w_oihw, gamma, beta, running_mean, running_var,
                   eps=1e-5, tile_h=8):
    N, Cin, H, W = x_nchw.shape
    Cout = w_oihw.shape[0]
    K, S, P = 3, 2, 1
    Ho = (H + 2 * P - K) // S + 1
    Wo = (W + 2 * P - K) // S + 1

    TH = max(8, (tile_h // 8) * 8)          # sublane-aligned row tile
    n_t = -(-Ho // TH)
    Ho_pad = n_t * TH

    Wph = Wo + 1                            # column pairs (need pair ow+1 for kw=2)
    Hp_eff = 2 * Ho_pad + 1                 # padded rows actually touched
    Wp_eff = 2 * Wph

    # NHWC, bf16 matmul operands, zero padding (conv pad + alignment pad).
    x = jnp.transpose(x_nchw, (0, 2, 3, 1)).astype(jnp.bfloat16)
    xpad = jnp.pad(x, ((0, 0), (P, Hp_eff - H - P), (P, Wp_eff - W - P), (0, 0)))
    # pack column pairs into the last dim: (N, Hp_eff, Wph, 2*Cin) -- pure reshape
    xq = xpad.reshape(N, Hp_eff, Wph, 2 * Cin)
    # three row-phase views, one per kh tap: rk[n, oh] = padded row 2*oh + k
    r_views = [xq[:, k:k + 2 * Ho_pad:2, :, :] for k in range(3)]

    # Fold BN: scale into the weights (free, trace-time), shift kept for epilogue.
    scale = (gamma.astype(jnp.float32) /
             jnp.sqrt(running_var.astype(jnp.float32) + eps))
    shift = (beta.astype(jnp.float32) -
             running_mean.astype(jnp.float32) * scale).reshape(1, Cout)
    w_k = jnp.transpose(w_oihw.astype(jnp.float32) * scale[:, None, None, None],
                        (2, 3, 1, 0))                      # (kh, kw, cin, cout)
    wa = w_k[:, 0:2, :, :].reshape(3, 2 * Cin, Cout).astype(jnp.bfloat16)
    wb = w_k[:, 2, :, :].astype(jnp.bfloat16)              # (3, Cin, Cout)

    out = pl.pallas_call(
        _conv_bn_relu_kernel,
        out_shape=jax.ShapeDtypeStruct((N, Ho_pad * Wo, Cout), jnp.float32),
        grid=(N, n_t),
        in_specs=[
            pl.BlockSpec((1, TH, Wph, 2 * Cin), lambda n, t: (n, t, 0, 0)),
            pl.BlockSpec((1, TH, Wph, 2 * Cin), lambda n, t: (n, t, 0, 0)),
            pl.BlockSpec((1, TH, Wph, 2 * Cin), lambda n, t: (n, t, 0, 0)),
            pl.BlockSpec((3, 2 * Cin, Cout), lambda n, t: (0, 0, 0)),
            pl.BlockSpec((3, Cin, Cout), lambda n, t: (0, 0, 0)),
            pl.BlockSpec((1, Cout), lambda n, t: (0, 0)),
        ],
        out_specs=pl.BlockSpec((1, TH * Wo, Cout), lambda n, t: (n, t, 0)),
        compiler_params=pltpu.CompilerParams(
            dimension_semantics=("parallel", "parallel")),
    )(r_views[0], r_views[1], r_views[2], wa, wb, shift)

    y = out.reshape(N, Ho_pad, Wo, Cout)[:, :Ho]           # drop row-tile padding
    return jnp.transpose(y, (0, 3, 1, 2))                  # back to NCHW


# ---------------------------------------------------------------------------
# Pure-JAX reference (PyTorch module semantics, eval-mode BN), f32 throughout.
# ---------------------------------------------------------------------------
def reference(x_nchw, w_oihw, gamma, beta, rmean, rvar, eps=1e-5):
    y = jax.lax.conv_general_dilated(
        x_nchw, w_oihw, window_strides=(2, 2), padding=((1, 1), (1, 1)),
        dimension_numbers=("NCHW", "OIHW", "NCHW"),
        precision=jax.lax.Precision.HIGHEST)
    scale = gamma / jnp.sqrt(rvar + eps)
    shift = beta - rmean * scale
    y = y * scale[None, :, None, None] + shift[None, :, None, None]
    return jnp.maximum(y, 0.0)


if __name__ == "__main__":
    key = jax.random.PRNGKey(0)
    k1, k2, k3, k4, k5, k6 = jax.random.split(key, 6)

    N, w_in, w_out, H, W = 2, 4, 8, 16, 16
    x = jax.random.normal(k1, (N, w_in, H, W), dtype=jnp.float32)
    w_conv = 0.1 * jax.random.normal(k2, (w_out, w_in, 3, 3), dtype=jnp.float32)
    gamma = 1.0 + 0.1 * jax.random.normal(k3, (w_out,), dtype=jnp.float32)
    beta = 0.1 * jax.random.normal(k4, (w_out,), dtype=jnp.float32)
    rmean = 0.05 * jax.random.normal(k5, (w_out,), dtype=jnp.float32)
    rvar = 1.0 + jnp.abs(0.1 * jax.random.normal(k6, (w_out,), dtype=jnp.float32))

    out = simple_stem_in(x, w_conv, gamma, beta, rmean, rvar)
    out = jax.block_until_ready(out)

    ref = reference(x, w_conv, gamma, beta, rmean, rvar)
    assert out.shape == (N, w_out, H // 2, W // 2), out.shape
    # tolerance covers bf16 rounding of the matmul operands (f32 accumulation)
    assert bool(jnp.allclose(out, ref, atol=2e-2, rtol=2e-2)), "mismatch vs reference"

    print("KERNEL_OK")
</pallas_src>

<mosaic_0001>
module attributes {stable_mosaic.version = 11 : i64} {
  func.func @_conv_bn_relu_kernel(%arg0: i32, %arg1: i32, %arg2: memref<1x8x9x8xbf16, #tpu.memory_space<vmem>>, %arg3: memref<1x8x9x8xbf16, #tpu.memory_space<vmem>>, %arg4: memref<1x8x9x8xbf16, #tpu.memory_space<vmem>>, %arg5: memref<3x8x8xbf16, #tpu.memory_space<vmem>>, %arg6: memref<3x4x8xbf16, #tpu.memory_space<vmem>>, %arg7: memref<1x8xf32, #tpu.memory_space<vmem>>, %arg8: memref<1x64x8xf32, #tpu.memory_space<vmem>>) attributes {dimension_semantics = [#tpu.dimension_semantics<parallel>, #tpu.dimension_semantics<parallel>], iteration_bounds = array<i64: 2, 1>, scalar_prefetch = 0 : i64, scratch_operands = 0 : i64, tpu.core_type = #tpu.core_type<tc>, window_params = [{transform_indices = @transform_0, window_bounds = array<i64: 1, 8, 9, 8>}, {transform_indices = @transform_1, window_bounds = array<i64: 1, 8, 9, 8>}, {transform_indices = @transform_2, window_bounds = array<i64: 1, 8, 9, 8>}, {pipeline_mode = #tpu.pipeline_mode<synchronous>, transform_indices = @transform_3, window_bounds = array<i64: 3, 8, 8>}, {pipeline_mode = #tpu.pipeline_mode<synchronous>, transform_indices = @transform_4, window_bounds = array<i64: 3, 4, 8>}, {pipeline_mode = #tpu.pipeline_mode<synchronous>, transform_indices = @transform_5, window_bounds = array<i64: 1, 8>}, {transform_indices = @transform_6, window_bounds = array<i64: 1, 64, 8>}]} {
    %cst = arith.constant 0.000000e+00 : f32
    %0 = vector.broadcast %cst : f32 to vector<64x8xf32>
    %c0 = arith.constant 0 : index
    %c0_0 = arith.constant 0 : index
    %c0_1 = arith.constant 0 : index
    %c0_2 = arith.constant 0 : index
    %1 = vector.load %arg2[%c0, %c0_0, %c0_1, %c0_2] : memref<1x8x9x8xbf16, #tpu.memory_space<vmem>>, vector<1x8x9x8xbf16>
    %2 = vector.shape_cast %1 : vector<1x8x9x8xbf16> to vector<8x9x8xbf16>
    %3 = vector.extract_strided_slice %2 {offsets = [0, 0, 0], sizes = [8, 8, 8], strides = [1, 1, 1]} : vector<8x9x8xbf16> to vector<8x8x8xbf16>
    %4 = vector.shape_cast %3 : vector<8x8x8xbf16> to vector<64x8xbf16>
    %5 = vector.extract_strided_slice %2 {offsets = [0, 1, 0], sizes = [8, 8, 4], strides = [1, 1, 1]} : vector<8x9x8xbf16> to vector<8x8x4xbf16>
    %6 = vector.shape_cast %5 : vector<8x8x4xbf16> to vector<64x4xbf16>
    %c0_3 = arith.constant 0 : index
    %c0_4 = arith.constant 0 : index
    %c0_5 = arith.constant 0 : index
    %7 = vector.load %arg5[%c0_3, %c0_4, %c0_5] : memref<3x8x8xbf16, #tpu.memory_space<vmem>>, vector<1x8x8xbf16>
    %8 = vector.shape_cast %7 : vector<1x8x8xbf16> to vector<8x8xbf16>
    %cst_6 = arith.constant dense<0.000000e+00> : vector<64x8xf32>
    %9 = tpu.matmul %4, %8, %cst_6 {dimension_numbers = #tpu.dot_dimension_numbers<[1], [0], [0], [1], [0, 0, 1, 1], [], []>} : vector<64x8xbf16>, vector<8x8xbf16>, vector<64x8xf32> -> vector<64x8xf32>
    %10 = arith.addf %0, %9 : vector<64x8xf32>
    %c0_7 = arith.constant 0 : index
    %c0_8 = arith.constant 0 : index
    %c0_9 = arith.constant 0 : index
    %11 = vector.load %arg6[%c0_7, %c0_8, %c0_9] : memref<3x4x8xbf16, #tpu.memory_space<vmem>>, vector<1x4x8xbf16>
    %12 = vector.shape_cast %11 : vector<1x4x8xbf16> to vector<4x8xbf16>
    %cst_10 = arith.constant dense<0.000000e+00> : vector<64x8xf32>
    %13 = tpu.matmul %6, %12, %cst_10 {dimension_numbers = #tpu.dot_dimension_numbers<[1], [0], [0], [1], [0, 0, 1, 1], [], []>} : vector<64x4xbf16>, vector<4x8xbf16>, vector<64x8xf32> -> vector<64x8xf32>
    %14 = arith.addf %10, %13 : vector<64x8xf32>
    %c0_11 = arith.constant 0 : index
    %c0_12 = arith.constant 0 : index
    %c0_13 = arith.constant 0 : index
    %c0_14 = arith.constant 0 : index
    %15 = vector.load %arg3[%c0_11, %c0_12, %c0_13, %c0_14] : memref<1x8x9x8xbf16, #tpu.memory_space<vmem>>, vector<1x8x9x8xbf16>
    %16 = vector.shape_cast %15 : vector<1x8x9x8xbf16> to vector<8x9x8xbf16>
    %17 = vector.extract_strided_slice %16 {offsets = [0, 0, 0], sizes = [8, 8, 8], strides = [1, 1, 1]} : vector<8x9x8xbf16> to vector<8x8x8xbf16>
    %18 = vector.shape_cast %17 : vector<8x8x8xbf16> to vector<64x8xbf16>
    %19 = vector.extract_strided_slice %16 {offsets = [0, 1, 0], sizes = [8, 8, 4], strides = [1, 1, 1]} : vector<8x9x8xbf16> to vector<8x8x4xbf16>
    %20 = vector.shape_cast %19 : vector<8x8x4xbf16> to vector<64x4xbf16>
    %c1 = arith.constant 1 : index
    %c0_15 = arith.constant 0 : index
    %c0_16 = arith.constant 0 : index
    %21 = vector.load %arg5[%c1, %c0_15, %c0_16] : memref<3x8x8xbf16, #tpu.memory_space<vmem>>, vector<1x8x8xbf16>
    %22 = vector.shape_cast %21 : vector<1x8x8xbf16> to vector<8x8xbf16>
    %cst_17 = arith.constant dense<0.000000e+00> : vector<64x8xf32>
    %23 = tpu.matmul %18, %22, %cst_17 {dimension_numbers = #tpu.dot_dimension_numbers<[1], [0], [0], [1], [0, 0, 1, 1], [], []>} : vector<64x8xbf16>, vector<8x8xbf16>, vector<64x8xf32> -> vector<64x8xf32>
    %24 = arith.addf %14, %23 : vector<64x8xf32>
    %c1_18 = arith.constant 1 : index
    %c0_19 = arith.constant 0 : index
    %c0_20 = arith.constant 0 : index
    %25 = vector.load %arg6[%c1_18, %c0_19, %c0_20] : memref<3x4x8xbf16, #tpu.memory_space<vmem>>, vector<1x4x8xbf16>
    %26 = vector.shape_cast %25 : vector<1x4x8xbf16> to vector<4x8xbf16>
    %cst_21 = arith.constant dense<0.000000e+00> : vector<64x8xf32>
    %27 = tpu.matmul %20, %26, %cst_21 {dimension_numbers = #tpu.dot_dimension_numbers<[1], [0], [0], [1], [0, 0, 1, 1], [], []>} : vector<64x4xbf16>, vector<4x8xbf16>, vector<64x8xf32> -> vector<64x8xf32>
    %28 = arith.addf %24, %27 : vector<64x8xf32>
    %c0_22 = arith.constant 0 : index
    %c0_23 = arith.constant 0 : index
    %c0_24 = arith.constant 0 : index
    %c0_25 = arith.constant 0 : index
    %29 = vector.load %arg4[%c0_22, %c0_23, %c0_24, %c0_25] : memref<1x8x9x8xbf16, #tpu.memory_space<vmem>>, vector<1x8x9x8xbf16>
    %30 = vector.shape_cast %29 : vector<1x8x9x8xbf16> to vector<8x9x8xbf16>
    %31 = vector.extract_strided_slice %30 {offsets = [0, 0, 0], sizes = [8, 8, 8], strides = [1, 1, 1]} : vector<8x9x8xbf16> to vector<8x8x8xbf16>
    %32 = vector.shape_cast %31 : vector<8x8x8xbf16> to vector<64x8xbf16>
    %33 = vector.extract_strided_slice %30 {offsets = [0, 1, 0], sizes = [8, 8, 4], strides = [1, 1, 1]} : vector<8x9x8xbf16> to vector<8x8x4xbf16>
    %34 = vector.shape_cast %33 : vector<8x8x4xbf16> to vector<64x4xbf16>
    %c2 = arith.constant 2 : index
    %c0_26 = arith.constant 0 : index
    %c0_27 = arith.constant 0 : index
    %35 = vector.load %arg5[%c2, %c0_26, %c0_27] : memref<3x8x8xbf16, #tpu.memory_space<vmem>>, vector<1x8x8xbf16>
    %36 = vector.shape_cast %35 : vector<1x8x8xbf16> to vector<8x8xbf16>
    %cst_28 = arith.constant dense<0.000000e+00> : vector<64x8xf32>
    %37 = tpu.matmul %32, %36, %cst_28 {dimension_numbers = #tpu.dot_dimension_numbers<[1], [0], [0], [1], [0, 0, 1, 1], [], []>} : vector<64x8xbf16>, vector<8x8xbf16>, vector<64x8xf32> -> vector<64x8xf32>
    %38 = arith.addf %28, %37 : vector<64x8xf32>
    %c2_29 = arith.constant 2 : index
    %c0_30 = arith.constant 0 : index
    %c0_31 = arith.constant 0 : index
    %39 = vector.load %arg6[%c2_29, %c0_30, %c0_31] : memref<3x4x8xbf16, #tpu.memory_space<vmem>>, vector<1x4x8xbf16>
    %40 = vector.shape_cast %39 : vector<1x4x8xbf16> to vector<4x8xbf16>
    %cst_32 = arith.constant dense<0.000000e+00> : vector<64x8xf32>
    %41 = tpu.matmul %34, %40, %cst_32 {dimension_numbers = #tpu.dot_dimension_numbers<[1], [0], [0], [1], [0, 0, 1, 1], [], []>} : vector<64x4xbf16>, vector<4x8xbf16>, vector<64x8xf32> -> vector<64x8xf32>
    %42 = arith.addf %38, %41 : vector<64x8xf32>
    %c0_33 = arith.constant 0 : index
    %c0_34 = arith.constant 0 : index
    %43 = vector.load %arg7[%c0_33, %c0_34] : memref<1x8xf32, #tpu.memory_space<vmem>>, vector<1x8xf32>
    %44 = vector.broadcast %43 : vector<1x8xf32> to vector<64x8xf32>
    %45 = arith.addf %42, %44 : vector<64x8xf32>
    %cst_35 = arith.constant 0.000000e+00 : f32
    %46 = vector.broadcast %cst_35 : f32 to vector<64x8xf32>
    %47 = arith.maximumf %45, %46 : vector<64x8xf32>
    %c0_36 = arith.constant 0 : index
    %c0_37 = arith.constant 0 : index
    %c0_38 = arith.constant 0 : index
    %48 = vector.load %arg8[%c0_36, %c0_37, %c0_38] : memref<1x64x8xf32, #tpu.memory_space<vmem>>, vector<1x64x8xf32>
    %49 = vector.shape_cast %48 : vector<1x64x8xf32> to vector<64x8xf32>
    %50 = vector.shape_cast %47 : vector<64x8xf32> to vector<1x64x8xf32>
    tpu.vector_store %arg8[%c0_36, %c0_37, %c0_38], %50 {strides = array<i32>} : memref<1x64x8xf32, #tpu.memory_space<vmem>>, vector<1x64x8xf32>,
    return
  }
  func.func @transform_0(%arg0: i32, %arg1: i32) -> (i32, i32, i32, i32) {
    %c0_i32 = arith.constant 0 : i32
    %c0_i32_0 = arith.constant 0 : i32
    %c0_i32_1 = arith.constant 0 : i32
    return %arg0, %arg1, %c0_i32, %c0_i32_0 : i32, i32, i32, i32
  }
  func.func @transform_1(%arg0: i32, %arg1: i32) -> (i32, i32, i32, i32) {
    %c0_i32 = arith.constant 0 : i32
    %c0_i32_0 = arith.constant 0 : i32
    %c0_i32_1 = arith.constant 0 : i32
    return %arg0, %arg1, %c0_i32, %c0_i32_0 : i32, i32, i32, i32
  }
  func.func @transform_2(%arg0: i32, %arg1: i32) -> (i32, i32, i32, i32) {
    %c0_i32 = arith.constant 0 : i32
    %c0_i32_0 = arith.constant 0 : i32
    %c0_i32_1 = arith.constant 0 : i32
    return %arg0, %arg1, %c0_i32, %c0_i32_0 : i32, i32, i32, i32
  }
  func.func @transform_3(%arg0: i32, %arg1: i32) -> (i32, i32, i32) {
    %c0_i32 = arith.constant 0 : i32
    %c0_i32_0 = arith.constant 0 : i32
    %c0_i32_1 = arith.constant 0 : i32
    %c0_i32_2 = arith.constant 0 : i32
    return %c0_i32, %c0_i32_0, %c0_i32_1 : i32, i32, i32
  }
  func.func @transform_4(%arg0: i32, %arg1: i32) -> (i32, i32, i32) {
    %c0_i32 = arith.constant 0 : i32
    %c0_i32_0 = arith.constant 0 : i32
    %c0_i32_1 = arith.constant 0 : i32
    %c0_i32_2 = arith.constant 0 : i32
    return %c0_i32, %c0_i32_0, %c0_i32_1 : i32, i32, i32
  }
  func.func @transform_5(%arg0: i32, %arg1: i32) -> (i32, i32) {
    %c0_i32 = arith.constant 0 : i32
    %c0_i32_0 = arith.constant 0 : i32
    %c0_i32_1 = arith.constant 0 : i32
    return %c0_i32, %c0_i32_0 : i32, i32
  }
  func.func @transform_6(%arg0: i32, %arg1: i32) -> (i32, i32, i32) {
    %c0_i32 = arith.constant 0 : i32
    %c0_i32_0 = arith.constant 0 : i32
    return %arg0, %arg1, %c0_i32 : i32, i32, i32
  }
}

</mosaic_0001>

<llo_original>
// kernel: tpu_custom_call.1
$region0: #{tpu_custom_call.1}
  #allocation0 [shape = 'u32[]', space=smem, size = 0x4, offset = 0x4, fixed_abs, tag = 'smem constant byte address 0x4 - core index']
  #allocation1 [shape = 'u32[72,128]{1,0:T(1,128)}', space=vmem, size = 0x9000, scoped, tag = 'internal scratch']
  %s0 = inlined_call_operand.vmem [shape: bf16[2,8,9,8], index: 0, kind: input, shape index: {}]
  %s1 = inlined_call_operand.vmem [shape: bf16[2,8,9,8], index: 1, kind: input, shape index: {}]
  %s2 = inlined_call_operand.vmem [shape: bf16[2,8,9,8], index: 2, kind: input, shape index: {}]
  %s3 = inlined_call_operand.vmem [shape: bf16[3,8,8], index: 3, kind: input, shape index: {}]
  %s4 = inlined_call_operand.vmem [shape: bf16[3,4,8], index: 4, kind: input, shape index: {}]
  %s5 = inlined_call_operand.vmem [shape: f32[1,8], index: 5, kind: input, shape index: {}]
  %s6 = inlined_call_operand.vmem [shape: f32[2,64,8], index: 6, kind: output, shape index: {}]
  %s7 = sld [smem:[#allocation0]]
  $region57: #{tpu_custom_call.1} parent=0
    _
  %s9 = ssub.s32 1, %s7
  %s10 = scalar_select 0, %s9, %s7
  loop: start=0, step=1, limit=4
  $region2: #{tpu_custom_call.1} parent=0 // loop_pre_header
    _
  $region3: #{tpu_custom_call.1} parent=0 // loop_header
    %s12 = sphi 0, %s16
    %p13 = scmp.ge.s32.totalorder %s12, 4
    %s19 = sphi 0, %s31
    %s20 = sphi 0, %s27
    %s21 = sphi 0, %s19
    %s22 = sphi 0, %s20
    %s23 = sphi 0, %s21
    %s24 = sphi 0, %s22
    %s36 = sphi 0, %s38
    %s39 = sphi 0, %s36
    %s40 = sphi 0, %s39
    %s56 = sphi 0, %s40
    %s64 = sphi 0, %s66
    %s67 = sphi 0, %s64
    %s68 = sphi 0, %s67
    %s84 = sphi 0, %s68
    %s92 = sphi 0, %s94
    %s95 = sphi 0, %s92
    %s96 = sphi 0, %s95
    %s112 = sphi 0, %s96
    %s116 = sphi 0, %s116
    %s118 = sphi 0, %s116
    %s119 = sphi 0, %s118
    %s133 = sphi 0, %s119
    %s137 = sphi 0, %s137
    %s139 = sphi 0, %s137
    %s140 = sphi 0, %s139
    %s154 = sphi 0, %s140
    %s158 = sphi 0, %s158
    %s160 = sphi 0, %s158
    %s161 = sphi 0, %s160
    %s175 = sphi 0, %s161
    %s183 = sphi 0, %s185
    %s186 = sphi 0, %s183
    %s187 = sphi 0, %s186
    %s203 = sphi 0, %s187
  $region4: #{tpu_custom_call.1} parent=0 // loop_header_branch
    %15 = sbr.rel (%p13) target = $region8
  $region5: #{tpu_custom_call.1} parent=0 // loop_body
    %s17 = ssub.s32 %s12, 1
    %s18 = ssub.s32 %s12, 2
    %s25 = sadd.s32 1, %s20
    %p26 = scmp.ge.s32.totalorder %s25, 1
    %s27 = scalar_select %p26, 0, %s25
    %s28 = sadd.s32 1, %s19
    %s29 = scalar_select %p26, %s28, %s19
    %p30 = scmp.ge.s32.totalorder %s29, 2
    %s31 = scalar_select %p30, 0, %s29
    %s32 = ssub.s32 %s19, %s31
    %s33 = ssub.s32 %s20, %s27
    %s34 = sor.u32 %s32, %s33
    %p35 = scmp.eq.s32.totalorder %s34, 0
    %s37 = sadd.s32 %s36, 1
    %s38 = scalar_select %p35, %s36, %s37
    %p41 = pneg %p35
    %p42 = scmp.eq.s32.totalorder %s12, 1
    %p43 = por %p41, %p42
    %p44 = scmp.ne.s32.totalorder %s36, %s39
    %p45 = scmp.eq.s32.totalorder %s12, 0
    %p46 = por %p44, %p45
    %p47 = scmp.ne.s32.totalorder %s36, %s39
    %p48 = scmp.eq.s32.totalorder %s17, 1
    %p49 = por %p47, %p48
    %p50 = scmp.ne.s32.totalorder %s39, %s40
    %p51 = scmp.eq.s32.totalorder %s17, 0
    %p52 = por %p50, %p51
    %p53 = scmp.ne.s32.totalorder %s39, %s40
    %p54 = scmp.eq.s32.totalorder %s18, 1
    %p55 = por %p53, %p54
    %p57 = scmp.ne.s32.totalorder %s40, %s56
    %p58 = scmp.eq.s32.totalorder %s18, 0
    %p59 = por %p57, %p58
    %s60 = ssub.s32 %s19, %s31
    %s61 = ssub.s32 %s20, %s27
    %s62 = sor.u32 %s60, %s61
    %p63 = scmp.eq.s32.totalorder %s62, 0
    %s65 = sadd.s32 %s64, 1
    %s66 = scalar_select %p63, %s64, %s65
    %p69 = pneg %p63
    %p70 = scmp.eq.s32.totalorder %s12, 1
    %p71 = por %p69, %p70
    %p72 = scmp.ne.s32.totalorder %s64, %s67
    %p73 = scmp.eq.s32.totalorder %s12, 0
    %p74 = por %p72, %p73
    %p75 = scmp.ne.s32.totalorder %s64, %s67
    %p76 = scmp.eq.s32.totalorder %s17, 1
    %p77 = por %p75, %p76
    %p78 = scmp.ne.s32.totalorder %s67, %s68
    %p79 = scmp.eq.s32.totalorder %s17, 0
    %p80 = por %p78, %p79
    %p81 = scmp.ne.s32.totalorder %s67, %s68
    %p82 = scmp.eq.s32.totalorder %s18, 1
    %p83 = por %p81, %p82
    %p85 = scmp.ne.s32.totalorder %s68, %s84
    %p86 = scmp.eq.s32.totalorder %s18, 0
    %p87 = por %p85, %p86
    %s88 = ssub.s32 %s19, %s31
    %s89 = ssub.s32 %s20, %s27
    %s90 = sor.u32 %s88, %s89
    %p91 = scmp.eq.s32.totalorder %s90, 0
    %s93 = sadd.s32 %s92, 1
    %s94 = scalar_select %p91, %s92, %s93
    %p97 = pneg %p91
    %p98 = scmp.eq.s32.totalorder %s12, 1
    %p99 = por %p97, %p98
    %p100 = scmp.ne.s32.totalorder %s92, %s95
    %p101 = scmp.eq.s32.totalorder %s12, 0
    %p102 = por %p100, %p101
    %p103 = scmp.ne.s32.totalorder %s92, %s95
    %p104 = scmp.eq.s32.totalorder %s17, 1
    %p105 = por %p103, %p104
    %p106 = scmp.ne.s32.totalorder %s95, %s96
    %p107 = scmp.eq.s32.totalorder %s17, 0
    %p108 = por %p106, %p107
    %p109 = scmp.ne.s32.totalorder %s95, %s96
    %p110 = scmp.eq.s32.totalorder %s18, 1
    %p111 = por %p109, %p110
    %p113 = scmp.ne.s32.totalorder %s96, %s112
    %p114 = scmp.eq.s32.totalorder %s18, 0
    %p115 = por %p113, %p114
    %s117 = sadd.s32 %s116, 1
    %p120 = scmp.eq.s32.totalorder %s12, 1
    %p121 = scmp.ne.s32.totalorder %s116, %s118
    %p122 = scmp.eq.s32.totalorder %s12, 0
    %p123 = por %p121, %p122
    %p124 = scmp.ne.s32.totalorder %s116, %s118
    %p125 = scmp.eq.s32.totalorder %s17, 1
    %p126 = por %p124, %p125
    %p127 = scmp.ne.s32.totalorder %s118, %s119
    %p128 = scmp.eq.s32.totalorder %s17, 0
    %p129 = por %p127, %p128
    %p130 = scmp.ne.s32.totalorder %s118, %s119
    %p131 = scmp.eq.s32.totalorder %s18, 1
    %p132 = por %p130, %p131
    %p134 = scmp.ne.s32.totalorder %s119, %s133
    %p135 = scmp.eq.s32.totalorder %s18, 0
    %p136 = por %p134, %p135
    %s138 = sadd.s32 %s137, 1
    %p141 = scmp.eq.s32.totalorder %s12, 1
    %p142 = scmp.ne.s32.totalorder %s137, %s139
    %p143 = scmp.eq.s32.totalorder %s12, 0
    %p144 = por %p142, %p143
    %p145 = scmp.ne.s32.totalorder %s137, %s139
    %p146 = scmp.eq.s32.totalorder %s17, 1
    %p147 = por %p145, %p146
    %p148 = scmp.ne.s32.totalorder %s139, %s140
    %p149 = scmp.eq.s32.totalorder %s17, 0
    %p150 = por %p148, %p149
    %p151 = scmp.ne.s32.totalorder %s139, %s140
    %p152 = scmp.eq.s32.totalorder %s18, 1
    %p153 = por %p151, %p152
    %p155 = scmp.ne.s32.totalorder %s140, %s154
    %p156 = scmp.eq.s32.totalorder %s18, 0
    %p157 = por %p155, %p156
    %s159 = sadd.s32 %s158, 1
    %p162 = scmp.eq.s32.totalorder %s12, 1
    %p163 = scmp.ne.s32.totalorder %s158, %s160
    %p164 = scmp.eq.s32.totalorder %s12, 0
    %p165 = por %p163, %p164
    %p166 = scmp.ne.s32.totalorder %s158, %s160
    %p167 = scmp.eq.s32.totalorder %s17, 1
    %p168 = por %p166, %p167
    %p169 = scmp.ne.s32.totalorder %s160, %s161
    %p170 = scmp.eq.s32.totalorder %s17, 0
    %p171 = por %p169, %p170
    %p172 = scmp.ne.s32.totalorder %s160, %s161
    %p173 = scmp.eq.s32.totalorder %s18, 1
    %p174 = por %p172, %p173
    %p176 = scmp.ne.s32.totalorder %s161, %s175
    %p177 = scmp.eq.s32.totalorder %s18, 0
    %p178 = por %p176, %p177
    %s179 = ssub.s32 %s19, %s31
    %s180 = ssub.s32 %s20, %s27
    %s181 = sor.u32 %s179, %s180
    %p182 = scmp.eq.s32.totalorder %s181, 0
    %s184 = sadd.s32 %s183, 1
    %s185 = scalar_select %p182, %s183, %s184
    %p188 = pneg %p182
    %p189 = scmp.eq.s32.totalorder %s12, 1
    %p190 = por %p188, %p189
    %p191 = scmp.ne.s32.totalorder %s183, %s186
    %p192 = scmp.eq.s32.totalorder %s12, 0
    %p193 = por %p191, %p192
    %p194 = scmp.ne.s32.totalorder %s183, %s186
    %p195 = scmp.eq.s32.totalorder %s17, 1
    %p196 = por %p194, %p195
    %p197 = scmp.ne.s32.totalorder %s186, %s187
    %p198 = scmp.eq.s32.totalorder %s17, 0
    %p199 = por %p197, %p198
    %p200 = scmp.ne.s32.totalorder %s186, %s187
    %p201 = scmp.eq.s32.totalorder %s18, 1
    %p202 = por %p200, %p201
    %p204 = scmp.ne.s32.totalorder %s187, %s203
    %p205 = scmp.eq.s32.totalorder %s18, 0
    %p206 = por %p204, %p205
    %p207 = scmp.le.s32.totalorder 1, %s12
    %p208 = scmp.lt.s32.totalorder %s12, 3
    %p209 = pnand %p207, %p208
    %p210 = pneg %p209
    // Predicated region
    $region9: #{tpu_custom_call.1} parent=5 // pred_check
      _
    $region10: #{tpu_custom_call.1} parent=5 // pred_check_branch
      %212 = sbr.rel (%p209) target = $region12
    $region11: #{tpu_custom_call.1} parent=5 // pred_region
      %s213 = ssub.s32 %s12, 1
      // Predicated region
      $region13: #{tpu_custom_call.1} parent=11 // pred_check
        %p214 = pneg %p129
      $region14: #{tpu_custom_call.1} parent=11 // pred_check_branch
        %216 = sbr.rel (%p214) target = $region16
      $region15: #{tpu_custom_call.1} parent=11 // pred_region
        _
      $region16: #{tpu_custom_call.1} parent=11 // pred_fallthru
        _
      // Predicated region
      $region17: #{tpu_custom_call.1} parent=11 // pred_check
        %p217 = pneg %p150
      $region18: #{tpu_custom_call.1} parent=11 // pred_check_branch
        %219 = sbr.rel (%p217) target = $region20
      $region19: #{tpu_custom_call.1} parent=11 // pred_region
        _
      $region20: #{tpu_custom_call.1} parent=11 // pred_fallthru
        _
      // Predicated region
      $region21: #{tpu_custom_call.1} parent=11 // pred_check
        %p220 = pneg %p171
      $region22: #{tpu_custom_call.1} parent=11 // pred_check_branch
        %222 = sbr.rel (%p220) target = $region24
      $region23: #{tpu_custom_call.1} parent=11 // pred_region
        _
      $region24: #{tpu_custom_call.1} parent=11 // pred_fallthru
        _
    $region12: #{tpu_custom_call.1} parent=5 // pred_fallthru
      _
    %p223 = scmp.lt.s32.totalorder %s12, 2
    // Predicated region
    $region25: #{tpu_custom_call.1} parent=5 // pred_check
      %p224 = pneg %p223
    $region26: #{tpu_custom_call.1} parent=5 // pred_check_branch
      %226 = sbr.rel (%p224) target = $region28
    $region27: #{tpu_custom_call.1} parent=5 // pred_region
      // Predicated region
      $region29: #{tpu_custom_call.1} parent=27 // pred_check
        %p227 = pneg %p46
      $region30: #{tpu_custom_call.1} parent=27 // pred_check_branch
        %229 = sbr.rel (%p227) target = $region32
      $region31: #{tpu_custom_call.1} parent=27 // pred_region
        %s230 = smul.u32 8, %s20
        %p231 = scmp.lt.s32.totalorder %s19, 1
        %s232 = scalar_select %p231, %s19, 1
        %p233 = scmp.lt.s32.totalorder %s230, 7
        %s234 = scalar_select %p233, %s230, 7
        %s235 = smul.addr %s234, 2
        %s236 = smul.addr %s232, 16
        %s237 = sadd.s32 %s235, %s236
        %s238 = smul.addr %s237, 4
        %s239 = scalar_lea.vmem %s0, %s238
        %s240 = smul.u32 8, %s20
      $region32: #{tpu_custom_call.1} parent=27 // pred_fallthru
        _
      // Predicated region
      $region33: #{tpu_custom_call.1} parent=27 // pred_check
        %p241 = pneg %p74
      $region34: #{tpu_custom_call.1} parent=27 // pred_check_branch
        %243 = sbr.rel (%p241) target = $region36
      $region35: #{tpu_custom_call.1} parent=27 // pred_region
        %s244 = smul.u32 8, %s20
        %p245 = scmp.lt.s32.totalorder %s19, 1
        %s246 = scalar_select %p245, %s19, 1
        %p247 = scmp.lt.s32.totalorder %s244, 7
        %s248 = scalar_select %p247, %s244, 7
        %s249 = smul.addr %s248, 2
        %s250 = smul.addr %s246, 16
        %s251 = sadd.s32 %s249, %s250
        %s252 = smul.addr %s251, 4
        %s253 = scalar_lea.vmem %s1, %s252
        %s254 = smul.u32 8, %s20
      $region36: #{tpu_custom_call.1} parent=27 // pred_fallthru
        _
      // Predicated region
      $region37: #{tpu_custom_call.1} parent=27 // pred_check
        %p255 = pneg %p102
      $region38: #{tpu_custom_call.1} parent=27 // pred_check_branch
        %257 = sbr.rel (%p255) target = $region40
      $region39: #{tpu_custom_call.1} parent=27 // pred_region
        %s258 = smul.u32 8, %s20
        %p259 = scmp.lt.s32.totalorder %s19, 1
        %s260 = scalar_select %p259, %s19, 1
        %p261 = scmp.lt.s32.totalorder %s258, 7
        %s262 = scalar_select %p261, %s258, 7
        %s263 = smul.addr %s262, 2
        %s264 = smul.addr %s260, 16
        %s265 = sadd.s32 %s263, %s264
        %s266 = smul.addr %s265, 4
        %s267 = scalar_lea.vmem %s2, %s266
        %s268 = smul.u32 8, %s20
      $region40: #{tpu_custom_call.1} parent=27 // pred_fallthru
        _
    $region28: #{tpu_custom_call.1} parent=5 // pred_fallthru
      _
    %p269 = scmp.le.s32.totalorder 1, %s12
    %p270 = scmp.lt.s32.totalorder %s12, 3
    %p271 = pnand %p269, %p270
    %p272 = pneg %p271
    // Predicated region
    $region41: #{tpu_custom_call.1} parent=5 // pred_check
      _
    $region42: #{tpu_custom_call.1} parent=5 // pred_check_branch
      %274 = sbr.rel (%p271) target = $region44
    $region43: #{tpu_custom_call.1} parent=5 // pred_region
      %s275 = ssub.s32 %s12, 1
      %s276 = smul.u32 8, %s22
      %p277 = scmp.lt.s32.totalorder %s21, 1
      %s278 = scalar_select %p277, %s21, 1
      %p279 = scmp.lt.s32.totalorder %s276, 7
      %s280 = scalar_select %p279, %s276, 7
      %s281 = smul.addr %s280, 2
      %s282 = smul.addr %s278, 16
      %s283 = sadd.s32 %s281, %s282
      %s284 = smul.addr %s283, 4
      %s285 = scalar_lea.vmem %s0, %s284
      %p286 = pneg %p52
      %p287 = pneg %p49
      %s288 = smul.u32 8, %s22
      %p289 = scmp.lt.s32.totalorder %s21, 1
      %s290 = scalar_select %p289, %s21, 1
      %p291 = scmp.lt.s32.totalorder %s288, 7
      %s292 = scalar_select %p291, %s288, 7
      %s293 = smul.addr %s292, 2
      %s294 = smul.addr %s290, 16
      %s295 = sadd.s32 %s293, %s294
      %s296 = smul.addr %s295, 4
      %s297 = scalar_lea.vmem %s1, %s296
      %p298 = pneg %p80
      %p299 = pneg %p77
      %s300 = smul.u32 8, %s22
      %p301 = scmp.lt.s32.totalorder %s21, 1
      %s302 = scalar_select %p301, %s21, 1
      %p303 = scmp.lt.s32.totalorder %s300, 7
      %s304 = scalar_select %p303, %s300, 7
      %s305 = smul.addr %s304, 2
      %s306 = smul.addr %s302, 16
      %s307 = sadd.s32 %s305, %s306
      %s308 = smul.addr %s307, 4
      %s309 = scalar_lea.vmem %s2, %s308
      %p310 = pneg %p108
      %p311 = pneg %p105
      %p312 = pneg %p129
      %p313 = pneg %p126
      %p314 = pneg %p150
      %p315 = pneg %p147
      %p316 = pneg %p171
      %p317 = pneg %p168
      %p318 = pneg %p199
      %p319 = pneg %p196
      %s320 = smul.u32 8, %s22
      %p321 = scmp.lt.s32.totalorder %s21, 1
      %s322 = scalar_select %p321, %s21, 1
      %p323 = scmp.lt.s32.totalorder %s320, 7
      %s324 = scalar_select %p323, %s320, 7
      %s325 = smul.addr %s322, 8
      %s326 = sadd.s32 %s324, %s325
      %s327 = smul.addr %s326, 8
      %s328 = scalar_lea.vmem %s6, %s327
      %s329 = smul.u32 8, %s22
      %p330 = scmp.lt.s32.totalorder %s21, 1
      %s331 = scalar_select %p330, %s21, 1
      %p332 = scmp.lt.s32.totalorder %s329, 7
      %s333 = scalar_select %p332, %s329, 7
      %s334 = smul.addr %s333, 2
      %s335 = smul.addr %s331, 16
      %s336 = sadd.s32 %s334, %s335
      %s337 = smul.addr %s336, 4
      %s338 = scalar_lea.vmem %s0, %s337
      %s339 = smul.u32 8, %s22
      %s340 = smul.u32 8, %s22
      %p341 = scmp.lt.s32.totalorder %s21, 1
      %s342 = scalar_select %p341, %s21, 1
      %p343 = scmp.lt.s32.totalorder %s340, 7
      %s344 = scalar_select %p343, %s340, 7
      %s345 = smul.addr %s344, 2
      %s346 = smul.addr %s342, 16
      %s347 = sadd.s32 %s345, %s346
      %s348 = smul.addr %s347, 4
      %s349 = scalar_lea.vmem %s1, %s348
      %s350 = smul.u32 8, %s22
      %s351 = smul.u32 8, %s22
      %p352 = scmp.lt.s32.totalorder %s21, 1
      %s353 = scalar_select %p352, %s21, 1
      %p354 = scmp.lt.s32.totalorder %s351, 7
      %s355 = scalar_select %p354, %s351, 7
      %s356 = smul.addr %s355, 2
      %s357 = smul.addr %s353, 16
      %s358 = sadd.s32 %s356, %s357
      %s359 = smul.addr %s358, 4
      %s360 = scalar_lea.vmem %s2, %s359
      %s361 = smul.u32 8, %s22
      %s362 = smul.u32 8, %s22
      %p363 = scmp.lt.s32.totalorder %s21, 1
      %s364 = scalar_select %p363, %s21, 1
      %p365 = scmp.lt.s32.totalorder %s362, 7
      %s366 = scalar_select %p365, %s362, 7
      %s367 = smul.addr %s364, 8
      %s368 = sadd.s32 %s366, %s367
      %s369 = smul.addr %s368, 8
      %s370 = scalar_lea.vmem %s6, %s369
      %s371 = smul.u32 8, %s22
      %v373 = vld [vmem:[%s338] sm:$0xf]
      %v374 = vld [vmem:[%s338 + $0x4] sm:$0x1]
      %v375 = vld [vmem:[%s338 + $0x8] sm:$0xf]
      %v376 = vld [vmem:[%s338 + $0xc] sm:$0x1]
      %v377 = vld [vmem:[%s338 + $0x10] sm:$0xf]
      %v378 = vld [vmem:[%s338 + $0x14] sm:$0x1]
      %v379 = vld [vmem:[%s338 + $0x18] sm:$0xf]
      %v380 = vld [vmem:[%s338 + $0x1c] sm:$0x1]
      %v381 = vld [vmem:[%s338 + $0x20] sm:$0xf]
      %v382 = vld [vmem:[%s338 + $0x24] sm:$0x1]
      %v383 = vld [vmem:[%s338 + $0x28] sm:$0xf]
      %v384 = vld [vmem:[%s338 + $0x2c] sm:$0x1]
      %v385 = vld [vmem:[%s338 + $0x30] sm:$0xf]
      %v386 = vld [vmem:[%s338 + $0x34] sm:$0x1]
      %v387 = vld [vmem:[%s338 + $0x38] sm:$0xf]
      %v388 = vld [vmem:[%s338 + $0x3c] sm:$0x1]
      %vm389 = vsmask.f32 3328
      %vm390 = vsmask.f32 7440
      %vm391 = vmor %vm389, %vm390
      %v393 = vshrl.u32 %v373, 16
      %v395 = vrot.slane %v393, 4
      %v396 = vshll.u32 %v373, 16
      %v398 = vrot.slane %v396, 5
      %v399 = vor.u32 %v395, %v398
      %v400 = vrot.slane %v399, 4
      %v402 = vshll.u32 %v374, 16
      %v404 = vrot.slane %v402, 5
      %v405 = vsel %vm391, %v400, %v404
      %v407 = vshrl.u32 %v375, 16
      %v409 = vrot.slane %v407, 4
      %v410 = vshll.u32 %v375, 16
      %v412 = vrot.slane %v410, 5
      %v413 = vor.u32 %v409, %v412
      %v414 = vrot.slane %v413, 4
      %v416 = vshll.u32 %v376, 16
      %v418 = vrot.slane %v416, 5
      %v419 = vsel %vm391, %v414, %v418
      %v421 = vshrl.u32 %v377, 16
      %v423 = vrot.slane %v421, 4
      %v424 = vshll.u32 %v377, 16
      %v426 = vrot.slane %v424, 5
      %v427 = vor.u32 %v423, %v426
      %v428 = vrot.slane %v427, 4
      %v430 = vshll.u32 %v378, 16
      %v432 = vrot.slane %v430, 5
      %v433 = vsel %vm391, %v428, %v432
      %v435 = vshrl.u32 %v379, 16
      %v437 = vrot.slane %v435, 4
      %v438 = vshll.u32 %v379, 16
      %v440 = vrot.slane %v438, 5
      %v441 = vor.u32 %v437, %v440
      %v442 = vrot.slane %v441, 4
      %v444 = vshll.u32 %v380, 16
      %v446 = vrot.slane %v444, 5
      %v447 = vsel %vm391, %v442, %v446
      %v449 = vshrl.u32 %v381, 16
      %v451 = vrot.slane %v449, 4
      %v452 = vshll.u32 %v381, 16
      %v454 = vrot.slane %v452, 5
      %v455 = vor.u32 %v451, %v454
      %v456 = vrot.slane %v455, 4
      %v458 = vshll.u32 %v382, 16
      %v460 = vrot.slane %v458, 5
      %v461 = vsel %vm391, %v456, %v460
      %v463 = vshrl.u32 %v383, 16
      %v465 = vrot.slane %v463, 4
      %v466 = vshll.u32 %v383, 16
      %v468 = vrot.slane %v466, 5
      %v469 = vor.u32 %v465, %v468
      %v470 = vrot.slane %v469, 4
      %v472 = vshll.u32 %v384, 16
      %v474 = vrot.slane %v472, 5
      %v475 = vsel %vm391, %v470, %v474
      %v477 = vshrl.u32 %v385, 16
      %v479 = vrot.slane %v477, 4
      %v480 = vshll.u32 %v385, 16
      %v482 = vrot.slane %v480, 5
      %v483 = vor.u32 %v479, %v482
      %v484 = vrot.slane %v483, 4
      %v486 = vshll.u32 %v386, 16
      %v488 = vrot.slane %v486, 5
      %v489 = vsel %vm391, %v484, %v488
      %v491 = vshrl.u32 %v387, 16
      %v493 = vrot.slane %v491, 4
      %v494 = vshll.u32 %v387, 16
      %v496 = vrot.slane %v494, 5
      %v497 = vor.u32 %v493, %v496
      %v498 = vrot.slane %v497, 4
      %v500 = vshll.u32 %v388, 16
      %v502 = vrot.slane %v500, 5
      %v503 = vsel %vm391, %v498, %v502
      %v504 = vld [vmem:[%s3] sm:$0xf]
      %v505 = vld [vmem:[%s4] sm:$0x3]
      %v506 = vunpack.c.l.b16 %v405
      %v507 = vunpack.c.l.b16 %v419
      %v508 = vunpack.c.l.b16 %v433
      %v509 = vunpack.c.l.b16 %v447
      %v510 = vunpack.c.l.b16 %v461
      %v511 = vunpack.c.l.b16 %v475
      %v512 = vunpack.c.l.b16 %v489
      %v513 = vunpack.c.l.b16 %v503
      %v514 = vpack.c.b16 %v507, %v506
      %v515 = vpack.c.b16 %v509, %v508
      %v516 = vpack.c.b16 %v511, %v510
      %v517 = vpack.c.b16 %v513, %v512
      %vm518 = vcmask 31744
      %v520 = vsel %vm518, %v514, 0
      %v523 = vsel %vm518, %v515, 0
      %v526 = vsel %vm518, %v516, 0
      %v529 = vsel %vm518, %v517, 0
      %vm531 = vcmask 1041408
      %v533 = vsel %vm531, %v505, 0
      %535 = vmatpush.bf16.msra.mxu0 0
      %536 = vmatpush.bf16.msra.mxu0 0
      %537 = vmatpush.bf16.msra.mxu0 0
      %538 = vmatpush.bf16.msra.mxu0 0
      %539 = vmatpush.bf16.msra.mxu0 0
      %540 = vmatpush.bf16.msra.mxu0 0
      %541 = vmatpush.bf16.msra.mxu0 0
      %542 = vmatpush.bf16.msra.mxu0 %v533
      %543 = vmatmul.bf16.gmra.mxu0 %v520
      %v544 = vpop.f32.mrf.mxu0
      %v545 = vadd.f32 0.0, %v544
      %v546 = vpop.f32.mrf.mxu0
      %v547 = vadd.f32 0.0, %v546
      %548 = vmatmul.bf16.gmra.mxu0 %v523
      %v549 = vpop.f32.mrf.mxu0
      %v550 = vadd.f32 0.0, %v549
      %v551 = vpop.f32.mrf.mxu0
      %v552 = vadd.f32 0.0, %v551
      %553 = vmatmul.bf16.gmra.mxu0 %v526
      %v554 = vpop.f32.mrf.mxu0
      %v555 = vadd.f32 0.0, %v554
      %v556 = vpop.f32.mrf.mxu0
      %v557 = vadd.f32 0.0, %v556
      %558 = vmatmul.bf16.gmra.mxu0 %v529
      %v559 = vpop.f32.mrf.mxu0
      %v560 = vadd.f32 0.0, %v559
      %v561 = vpop.f32.mrf.mxu0
      %v562 = vadd.f32 0.0, %v561
      %563 = vdwg.mxu0
      %v572 = vunpack.c.l.b16 %v373
      %v573 = vunpack.c.l.b16 %v375
      %v574 = vunpack.c.l.b16 %v377
      %v575 = vunpack.c.l.b16 %v379
      %v576 = vunpack.c.l.b16 %v381
      %v577 = vunpack.c.l.b16 %v383
      %v578 = vunpack.c.l.b16 %v385
      %v579 = vunpack.c.l.b16 %v387
      %v580 = vpack.c.b16 %v573, %v572
      %v581 = vpack.c.b16 %v575, %v574
      %v582 = vpack.c.b16 %v577, %v576
      %v583 = vpack.c.b16 %v579, %v578
      %vm584 = vcmask 64512
      %v586 = vsel %vm584, %v580, 0
      %v589 = vsel %vm584, %v581, 0
      %v592 = vsel %vm584, %v582, 0
      %v595 = vsel %vm584, %v583, 0
      %vm597 = vcmask 1043456
      %v599 = vsel %vm597, %v504, 0
      %601 = vmatpush.bf16.msra.mxu0 0
      %602 = vmatpush.bf16.msra.mxu0 0
      %603 = vmatpush.bf16.msra.mxu0 0
      %604 = vmatpush.bf16.msra.mxu0 0
      %605 = vmatpush.bf16.msra.mxu0 0
      %606 = vmatpush.bf16.msra.mxu0 0
      %607 = vmatpush.bf16.msra.mxu0 0
      %608 = vmatpush.bf16.msra.mxu0 %v599
      %609 = vmatmul.bf16.gmra.mxu0 %v586
      %v610 = vpop.f32.mrf.mxu0
      %v611 = vadd.f32 %v545, %v610
      %v612 = vpop.f32.mrf.mxu0
      %v613 = vadd.f32 %v547, %v612
      %614 = vmatmul.bf16.gmra.mxu0 %v589
      %v615 = vpop.f32.mrf.mxu0
      %v616 = vadd.f32 %v550, %v615
      %v617 = vpop.f32.mrf.mxu0
      %v618 = vadd.f32 %v552, %v617
      %619 = vmatmul.bf16.gmra.mxu0 %v592
      %v620 = vpop.f32.mrf.mxu0
      %v621 = vadd.f32 %v555, %v620
      %v622 = vpop.f32.mrf.mxu0
      %v623 = vadd.f32 %v557, %v622
      %624 = vmatmul.bf16.gmra.mxu0 %v595
      %v625 = vpop.f32.mrf.mxu0
      %v626 = vadd.f32 %v560, %v625
      %v627 = vpop.f32.mrf.mxu0
      %v628 = vadd.f32 %v562, %v627
      %629 = vdwg.mxu0
      %v630 = vld [vmem:[%s349] sm:$0xf]
      %v631 = vld [vmem:[%s349 + $0x4] sm:$0x1]
      %v632 = vld [vmem:[%s349 + $0x8] sm:$0xf]
      %v633 = vld [vmem:[%s349 + $0xc] sm:$0x1]
      %v634 = vld [vmem:[%s349 + $0x10] sm:$0xf]
      %v635 = vld [vmem:[%s349 + $0x14] sm:$0x1]
      %v636 = vld [vmem:[%s349 + $0x18] sm:$0xf]
      %v637 = vld [vmem:[%s349 + $0x1c] sm:$0x1]
      %v638 = vld [vmem:[%s349 + $0x20] sm:$0xf]
      %v639 = vld [vmem:[%s349 + $0x24] sm:$0x1]
      %v640 = vld [vmem:[%s349 + $0x28] sm:$0xf]
      %v641 = vld [vmem:[%s349 + $0x2c] sm:$0x1]
      %v642 = vld [vmem:[%s349 + $0x30] sm:$0xf]
      %v643 = vld [vmem:[%s349 + $0x34] sm:$0x1]
      %v644 = vld [vmem:[%s349 + $0x38] sm:$0xf]
      %v645 = vld [vmem:[%s349 + $0x3c] sm:$0x1]
      %v647 = vshrl.u32 %v630, 16
      %v649 = vrot.slane %v647, 4
      %v650 = vshll.u32 %v630, 16
      %v652 = vrot.slane %v650, 5
      %v653 = vor.u32 %v649, %v652
      %v654 = vrot.slane %v653, 4
      %v656 = vshll.u32 %v631, 16
      %v658 = vrot.slane %v656, 5
      %v659 = vsel %vm391, %v654, %v658
      %v661 = vshrl.u32 %v632, 16
      %v663 = vrot.slane %v661, 4
      %v664 = vshll.u32 %v632, 16
      %v666 = vrot.slane %v664, 5
      %v667 = vor.u32 %v663, %v666
      %v668 = vrot.slane %v667, 4
      %v670 = vshll.u32 %v633, 16
      %v672 = vrot.slane %v670, 5
      %v673 = vsel %vm391, %v668, %v672
      %v675 = vshrl.u32 %v634, 16
      %v677 = vrot.slane %v675, 4
      %v678 = vshll.u32 %v634, 16
      %v680 = vrot.slane %v678, 5
      %v681 = vor.u32 %v677, %v680
      %v682 = vrot.slane %v681, 4
      %v684 = vshll.u32 %v635, 16
      %v686 = vrot.slane %v684, 5
      %v687 = vsel %vm391, %v682, %v686
      %v689 = vshrl.u32 %v636, 16
      %v691 = vrot.slane %v689, 4
      %v692 = vshll.u32 %v636, 16
      %v694 = vrot.slane %v692, 5
      %v695 = vor.u32 %v691, %v694
      %v696 = vrot.slane %v695, 4
      %v698 = vshll.u32 %v637, 16
      %v700 = vrot.slane %v698, 5
      %v701 = vsel %vm391, %v696, %v700
      %v703 = vshrl.u32 %v638, 16
      %v705 = vrot.slane %v703, 4
      %v706 = vshll.u32 %v638, 16
      %v708 = vrot.slane %v706, 5
      %v709 = vor.u32 %v705, %v708
      %v710 = vrot.slane %v709, 4
      %v712 = vshll.u32 %v639, 16
      %v714 = vrot.slane %v712, 5
      %v715 = vsel %vm391, %v710, %v714
      %v717 = vshrl.u32 %v640, 16
      %v719 = vrot.slane %v717, 4
      %v720 = vshll.u32 %v640, 16
      %v722 = vrot.slane %v720, 5
      %v723 = vor.u32 %v719, %v722
      %v724 = vrot.slane %v723, 4
      %v726 = vshll.u32 %v641, 16
      %v728 = vrot.slane %v726, 5
      %v729 = vsel %vm391, %v724, %v728
      %v731 = vshrl.u32 %v642, 16
      %v733 = vrot.slane %v731, 4
      %v734 = vshll.u32 %v642, 16
      %v736 = vrot.slane %v734, 5
      %v737 = vor.u32 %v733, %v736
      %v738 = vrot.slane %v737, 4
      %v740 = vshll.u32 %v643, 16
      %v742 = vrot.slane %v740, 5
      %v743 = vsel %vm391, %v738, %v742
      %v745 = vshrl.u32 %v644, 16
      %v747 = vrot.slane %v745, 4
      %v748 = vshll.u32 %v644, 16
      %v750 = vrot.slane %v748, 5
      %v751 = vor.u32 %v747, %v750
      %v752 = vrot.slane %v751, 4
      %v754 = vshll.u32 %v645, 16
      %v756 = vrot.slane %v754, 5
      %v757 = vsel %vm391, %v752, %v756
      %s758 = scalar_lea.vmem %s3, 4
      %v759 = vld [vmem:[%s758] sm:$0xf]
      %v768 = vunpack.c.l.b16 %v630
      %v769 = vunpack.c.l.b16 %v632
      %v770 = vunpack.c.l.b16 %v634
      %v771 = vunpack.c.l.b16 %v636
      %v772 = vunpack.c.l.b16 %v638
      %v773 = vunpack.c.l.b16 %v640
      %v774 = vunpack.c.l.b16 %v642
      %v775 = vunpack.c.l.b16 %v644
      %v776 = vpack.c.b16 %v769, %v768
      %v777 = vpack.c.b16 %v771, %v770
      %v778 = vpack.c.b16 %v773, %v772
      %v779 = vpack.c.b16 %v775, %v774
      %v781 = vsel %vm584, %v776, 0
      %v784 = vsel %vm584, %v777, 0
      %v787 = vsel %vm584, %v778, 0
      %v790 = vsel %vm584, %v779, 0
      %v793 = vsel %vm597, %v759, 0
      %795 = vmatpush.bf16.msra.mxu0 0
      %796 = vmatpush.bf16.msra.mxu0 0
      %797 = vmatpush.bf16.msra.mxu0 0
      %798 = vmatpush.bf16.msra.mxu0 0
      %799 = vmatpush.bf16.msra.mxu0 0
      %800 = vmatpush.bf16.msra.mxu0 0
      %801 = vmatpush.bf16.msra.mxu0 0
      %802 = vmatpush.bf16.msra.mxu0 %v793
      %803 = vmatmul.bf16.gmra.mxu0 %v781
      %v804 = vpop.f32.mrf.mxu0
      %v805 = vadd.f32 0.0, %v804
      %v806 = vpop.f32.mrf.mxu0
      %v807 = vadd.f32 0.0, %v806
      %808 = vmatmul.bf16.gmra.mxu0 %v784
      %v809 = vpop.f32.mrf.mxu0
      %v810 = vadd.f32 0.0, %v809
      %v811 = vpop.f32.mrf.mxu0
      %v812 = vadd.f32 0.0, %v811
      %813 = vmatmul.bf16.gmra.mxu0 %v787
      %v814 = vpop.f32.mrf.mxu0
      %v815 = vadd.f32 0.0, %v814
      %v816 = vpop.f32.mrf.mxu0
      %v817 = vadd.f32 0.0, %v816
      %818 = vmatmul.bf16.gmra.mxu0 %v790
      %v819 = vpop.f32.mrf.mxu0
      %v820 = vadd.f32 0.0, %v819
      %v821 = vpop.f32.mrf.mxu0
      %v822 = vadd.f32 0.0, %v821
      %823 = vdwg.mxu0
      %v824 = vadd.f32 %v611, %v805
      %v825 = vadd.f32 %v613, %v807
      %v826 = vadd.f32 %v616, %v810
      %v827 = vadd.f32 %v618, %v812
      %v828 = vadd.f32 %v621, %v815
      %v829 = vadd.f32 %v623, %v817
      %v830 = vadd.f32 %v626, %v820
      %v831 = vadd.f32 %v628, %v822
      %s832 = scalar_lea.vmem %s4, 2
      %v833 = vld [vmem:[%s832] sm:$0x3]
      %v834 = vunpack.c.l.b16 %v659
      %v835 = vunpack.c.l.b16 %v673
      %v836 = vunpack.c.l.b16 %v687
      %v837 = vunpack.c.l.b16 %v701
      %v838 = vunpack.c.l.b16 %v715
      %v839 = vunpack.c.l.b16 %v729
      %v840 = vunpack.c.l.b16 %v743
      %v841 = vunpack.c.l.b16 %v757
      %v842 = vpack.c.b16 %v835, %v834
      %v843 = vpack.c.b16 %v837, %v836
      %v844 = vpack.c.b16 %v839, %v838
      %v845 = vpack.c.b16 %v841, %v840
      %v847 = vsel %vm518, %v842, 0
      %v850 = vsel %vm518, %v843, 0
      %v853 = vsel %vm518, %v844, 0
      %v856 = vsel %vm518, %v845, 0
      %v859 = vsel %vm531, %v833, 0
      %861 = vmatpush.bf16.msra.mxu0 0
      %862 = vmatpush.bf16.msra.mxu0 0
      %863 = vmatpush.bf16.msra.mxu0 0
      %864 = vmatpush.bf16.msra.mxu0 0
      %865 = vmatpush.bf16.msra.mxu0 0
      %866 = vmatpush.bf16.msra.mxu0 0
      %867 = vmatpush.bf16.msra.mxu0 0
      %868 = vmatpush.bf16.msra.mxu0 %v859
      %869 = vmatmul.bf16.gmra.mxu0 %v847
      %v870 = vpop.f32.mrf.mxu0
      %v871 = vadd.f32 0.0, %v870
      %v872 = vpop.f32.mrf.mxu0
      %v873 = vadd.f32 0.0, %v872
      %874 = vmatmul.bf16.gmra.mxu0 %v850
      %v875 = vpop.f32.mrf.mxu0
      %v876 = vadd.f32 0.0, %v875
      %v877 = vpop.f32.mrf.mxu0
      %v878 = vadd.f32 0.0, %v877
      %879 = vmatmul.bf16.gmra.mxu0 %v853
      %v880 = vpop.f32.mrf.mxu0
      %v881 = vadd.f32 0.0, %v880
      %v882 = vpop.f32.mrf.mxu0
      %v883 = vadd.f32 0.0, %v882
      %884 = vmatmul.bf16.gmra.mxu0 %v856
      %v885 = vpop.f32.mrf.mxu0
      %v886 = vadd.f32 0.0, %v885
      %v887 = vpop.f32.mrf.mxu0
      %v888 = vadd.f32 0.0, %v887
      %889 = vdwg.mxu0
      %v890 = vadd.f32 %v824, %v871
      %v891 = vadd.f32 %v825, %v873
      %v892 = vadd.f32 %v826, %v876
      %v893 = vadd.f32 %v827, %v878
      %v894 = vadd.f32 %v828, %v881
      %v895 = vadd.f32 %v829, %v883
      %v896 = vadd.f32 %v830, %v886
      %v897 = vadd.f32 %v831, %v888
      %v898 = vld [vmem:[%s360] sm:$0xf]
      %v899 = vld [vmem:[%s360 + $0x4] sm:$0x1]
      %v900 = vld [vmem:[%s360 + $0x8] sm:$0xf]
      %v901 = vld [vmem:[%s360 + $0xc] sm:$0x1]
      %v902 = vld [vmem:[%s360 + $0x10] sm:$0xf]
      %v903 = vld [vmem:[%s360 + $0x14] sm:$0x1]
      %v904 = vld [vmem:[%s360 + $0x18] sm:$0xf]
      %v905 = vld [vmem:[%s360 + $0x1c] sm:$0x1]
      %v906 = vld [vmem:[%s360 + $0x20] sm:$0xf]
      %v907 = vld [vmem:[%s360 + $0x24] sm:$0x1]
      %v908 = vld [vmem:[%s360 + $0x28] sm:$0xf]
      %v909 = vld [vmem:[%s360 + $0x2c] sm:$0x1]
      %v910 = vld [vmem:[%s360 + $0x30] sm:$0xf]
      %v911 = vld [vmem:[%s360 + $0x34] sm:$0x1]
      %v912 = vld [vmem:[%s360 + $0x38] sm:$0xf]
      %v913 = vld [vmem:[%s360 + $0x3c] sm:$0x1]
      %v915 = vshrl.u32 %v898, 16
      %v917 = vrot.slane %v915, 4
      %v918 = vshll.u32 %v898, 16
      %v920 = vrot.slane %v918, 5
      %v921 = vor.u32 %v917, %v920
      %v922 = vrot.slane %v921, 4
      %v924 = vshll.u32 %v899, 16
      %v926 = vrot.slane %v924, 5
      %v927 = vsel %vm391, %v922, %v926
      %v929 = vshrl.u32 %v900, 16
      %v931 = vrot.slane %v929, 4
      %v932 = vshll.u32 %v900, 16
      %v934 = vrot.slane %v932, 5
      %v935 = vor.u32 %v931, %v934
      %v936 = vrot.slane %v935, 4
      %v938 = vshll.u32 %v901, 16
      %v940 = vrot.slane %v938, 5
      %v941 = vsel %vm391, %v936, %v940
      %v943 = vshrl.u32 %v902, 16
      %v945 = vrot.slane %v943, 4
      %v946 = vshll.u32 %v902, 16
      %v948 = vrot.slane %v946, 5
      %v949 = vor.u32 %v945, %v948
      %v950 = vrot.slane %v949, 4
      %v952 = vshll.u32 %v903, 16
      %v954 = vrot.slane %v952, 5
      %v955 = vsel %vm391, %v950, %v954
      %v957 = vshrl.u32 %v904, 16
      %v959 = vrot.slane %v957, 4
      %v960 = vshll.u32 %v904, 16
      %v962 = vrot.slane %v960, 5
      %v963 = vor.u32 %v959, %v962
      %v964 = vrot.slane %v963, 4
      %v966 = vshll.u32 %v905, 16
      %v968 = vrot.slane %v966, 5
      %v969 = vsel %vm391, %v964, %v968
      %v971 = vshrl.u32 %v906, 16
      %v973 = vrot.slane %v971, 4
      %v974 = vshll.u32 %v906, 16
      %v976 = vrot.slane %v974, 5
      %v977 = vor.u32 %v973, %v976
      %v978 = vrot.slane %v977, 4
      %v980 = vshll.u32 %v907, 16
      %v982 = vrot.slane %v980, 5
      %v983 = vsel %vm391, %v978, %v982
      %v985 = vshrl.u32 %v908, 16
      %v987 = vrot.slane %v985, 4
      %v988 = vshll.u32 %v908, 16
      %v990 = vrot.slane %v988, 5
      %v991 = vor.u32 %v987, %v990
      %v992 = vrot.slane %v991, 4
      %v994 = vshll.u32 %v909, 16
      %v996 = vrot.slane %v994, 5
      %v997 = vsel %vm391, %v992, %v996
      %v999 = vshrl.u32 %v910, 16
      %v1001 = vrot.slane %v999, 4
      %v1002 = vshll.u32 %v910, 16
      %v1004 = vrot.slane %v1002, 5
      %v1005 = vor.u32 %v1001, %v1004
      %v1006 = vrot.slane %v1005, 4
      %v1008 = vshll.u32 %v911, 16
      %v1010 = vrot.slane %v1008, 5
      %v1011 = vsel %vm391, %v1006, %v1010
      %v1013 = vshrl.u32 %v912, 16
      %v1015 = vrot.slane %v1013, 4
      %v1016 = vshll.u32 %v912, 16
      %v1018 = vrot.slane %v1016, 5
      %v1019 = vor.u32 %v1015, %v1018
      %v1020 = vrot.slane %v1019, 4
      %v1022 = vshll.u32 %v913, 16
      %v1024 = vrot.slane %v1022, 5
      %v1025 = vsel %vm391, %v1020, %v1024
      %s1026 = scalar_lea.vmem %s3, 8
      %v1027 = vld [vmem:[%s1026] sm:$0xf]
      %v1036 = vunpack.c.l.b16 %v898
      %v1037 = vunpack.c.l.b16 %v900
      %v1038 = vunpack.c.l.b16 %v902
      %v1039 = vunpack.c.l.b16 %v904
      %v1040 = vunpack.c.l.b16 %v906
      %v1041 = vunpack.c.l.b16 %v908
      %v1042 = vunpack.c.l.b16 %v910
      %v1043 = vunpack.c.l.b16 %v912
      %v1044 = vpack.c.b16 %v1037, %v1036
      %v1045 = vpack.c.b16 %v1039, %v1038
      %v1046 = vpack.c.b16 %v1041, %v1040
      %v1047 = vpack.c.b16 %v1043, %v1042
      %v1049 = vsel %vm584, %v1044, 0
      %v1052 = vsel %vm584, %v1045, 0
      %v1055 = vsel %vm584, %v1046, 0
      %v1058 = vsel %vm584, %v1047, 0
      %v1061 = vsel %vm597, %v1027, 0
      %1063 = vmatpush.bf16.msra.mxu0 0
      %1064 = vmatpush.bf16.msra.mxu0 0
      %1065 = vmatpush.bf16.msra.mxu0 0
      %1066 = vmatpush.bf16.msra.mxu0 0
      %1067 = vmatpush.bf16.msra.mxu0 0
      %1068 = vmatpush.bf16.msra.mxu0 0
      %1069 = vmatpush.bf16.msra.mxu0 0
      %1070 = vmatpush.bf16.msra.mxu0 %v1061
      %1071 = vmatmul.bf16.gmra.mxu0 %v1049
      %v1072 = vpop.f32.mrf.mxu0
      %v1073 = vadd.f32 0.0, %v1072
      %v1074 = vpop.f32.mrf.mxu0
      %v1075 = vadd.f32 0.0, %v1074
      %1076 = vmatmul.bf16.gmra.mxu0 %v1052
      %v1077 = vpop.f32.mrf.mxu0
      %v1078 = vadd.f32 0.0, %v1077
      %v1079 = vpop.f32.mrf.mxu0
      %v1080 = vadd.f32 0.0, %v1079
      %1081 = vmatmul.bf16.gmra.mxu0 %v1055
      %v1082 = vpop.f32.mrf.mxu0
      %v1083 = vadd.f32 0.0, %v1082
      %v1084 = vpop.f32.mrf.mxu0
      %v1085 = vadd.f32 0.0, %v1084
      %1086 = vmatmul.bf16.gmra.mxu0 %v1058
      %v1087 = vpop.f32.mrf.mxu0
      %v1088 = vadd.f32 0.0, %v1087
      %v1089 = vpop.f32.mrf.mxu0
      %v1090 = vadd.f32 0.0, %v1089
      %1091 = vdwg.mxu0
      %v1092 = vadd.f32 %v890, %v1073
      %v1093 = vadd.f32 %v891, %v1075
      %v1094 = vadd.f32 %v892, %v1078
      %v1095 = vadd.f32 %v893, %v1080
      %v1096 = vadd.f32 %v894, %v1083
      %v1097 = vadd.f32 %v895, %v1085
      %v1098 = vadd.f32 %v896, %v1088
      %v1099 = vadd.f32 %v897, %v1090
      %s1100 = scalar_lea.vmem %s4, 4
      %v1101 = vld [vmem:[%s1100] sm:$0x3]
      %v1102 = vunpack.c.l.b16 %v927
      %v1103 = vunpack.c.l.b16 %v941
      %v1104 = vunpack.c.l.b16 %v955
      %v1105 = vunpack.c.l.b16 %v969
      %v1106 = vunpack.c.l.b16 %v983
      %v1107 = vunpack.c.l.b16 %v997
      %v1108 = vunpack.c.l.b16 %v1011
      %v1109 = vunpack.c.l.b16 %v1025
      %v1110 = vpack.c.b16 %v1103, %v1102
      %v1111 = vpack.c.b16 %v1105, %v1104
      %v1112 = vpack.c.b16 %v1107, %v1106
      %v1113 = vpack.c.b16 %v1109, %v1108
      %v1115 = vsel %vm518, %v1110, 0
      %v1118 = vsel %vm518, %v1111, 0
      %v1121 = vsel %vm518, %v1112, 0
      %v1124 = vsel %vm518, %v1113, 0
      %v1127 = vsel %vm531, %v1101, 0
      %1129 = vmatpush.bf16.msra.mxu0 0
      %1130 = vmatpush.bf16.msra.mxu0 0
      %1131 = vmatpush.bf16.msra.mxu0 0
      %1132 = vmatpush.bf16.msra.mxu0 0
      %1133 = vmatpush.bf16.msra.mxu0 0
      %1134 = vmatpush.bf16.msra.mxu0 0
      %1135 = vmatpush.bf16.msra.mxu0 0
      %1136 = vmatpush.bf16.msra.mxu0 %v1127
      %1137 = vmatmul.bf16.gmra.mxu0 %v1115
      %v1138 = vpop.f32.mrf.mxu0
      %v1139 = vadd.f32 0.0, %v1138
      %v1140 = vpop.f32.mrf.mxu0
      %v1141 = vadd.f32 0.0, %v1140
      %1142 = vmatmul.bf16.gmra.mxu0 %v1118
      %v1143 = vpop.f32.mrf.mxu0
      %v1144 = vadd.f32 0.0, %v1143
      %v1145 = vpop.f32.mrf.mxu0
      %v1146 = vadd.f32 0.0, %v1145
      %1147 = vmatmul.bf16.gmra.mxu0 %v1121
      %v1148 = vpop.f32.mrf.mxu0
      %v1149 = vadd.f32 0.0, %v1148
      %v1150 = vpop.f32.mrf.mxu0
      %v1151 = vadd.f32 0.0, %v1150
      %1152 = vmatmul.bf16.gmra.mxu0 %v1124
      %v1153 = vpop.f32.mrf.mxu0
      %v1154 = vadd.f32 0.0, %v1153
      %v1155 = vpop.f32.mrf.mxu0
      %v1156 = vadd.f32 0.0, %v1155
      %1157 = vdwg.mxu0
      %v1158 = vadd.f32 %v1092, %v1139
      %v1159 = vadd.f32 %v1093, %v1141
      %v1160 = vadd.f32 %v1094, %v1144
      %v1161 = vadd.f32 %v1095, %v1146
      %v1162 = vadd.f32 %v1096, %v1149
      %v1163 = vadd.f32 %v1097, %v1151
      %v1164 = vadd.f32 %v1098, %v1154
      %v1165 = vadd.f32 %v1099, %v1156
      %v1166 = vld [vmem:[%s5] sm:$0x1]
      %v1168 = vperm.slane %v1166, 0
      %v1170 = vadd.f32 %v1158, %v1168
      %v1171 = vadd.f32 %v1159, %v1168
      %v1172 = vadd.f32 %v1160, %v1168
      %v1173 = vadd.f32 %v1161, %v1168
      %v1174 = vadd.f32 %v1162, %v1168
      %v1175 = vadd.f32 %v1163, %v1168
      %v1176 = vadd.f32 %v1164, %v1168
      %v1177 = vadd.f32 %v1165, %v1168
      %v1178 = vmax.f32 %v1170, 0.0
      %v1179 = vmax.f32 %v1171, 0.0
      %v1180 = vmax.f32 %v1172, 0.0
      %v1181 = vmax.f32 %v1173, 0.0
      %v1182 = vmax.f32 %v1174, 0.0
      %v1183 = vmax.f32 %v1175, 0.0
      %v1184 = vmax.f32 %v1176, 0.0
      %v1185 = vmax.f32 %v1177, 0.0
      %1186 = vst.msk [vmem:[%s370] sm:$0xff] %vm584, %v1178
      %1187 = vst.msk [vmem:[%s370 + $0x8] sm:$0xff] %vm584, %v1179
      %1188 = vst.msk [vmem:[%s370 + $0x10] sm:$0xff] %vm584, %v1180
      %1189 = vst.msk [vmem:[%s370 + $0x18] sm:$0xff] %vm584, %v1181
      %1190 = vst.msk [vmem:[%s370 + $0x20] sm:$0xff] %vm584, %v1182
      %1191 = vst.msk [vmem:[%s370 + $0x28] sm:$0xff] %vm584, %v1183
      %1192 = vst.msk [vmem:[%s370 + $0x30] sm:$0xff] %vm584, %v1184
      %1193 = vst.msk [vmem:[%s370 + $0x38] sm:$0xff] %vm584, %v1185
      %s1194 = smul.u32 8, %s22
      %p1195 = scmp.lt.s32.totalorder %s21, 1
      %s1196 = scalar_select %p1195, %s21, 1
      %p1197 = scmp.lt.s32.totalorder %s1194, 7
      %s1198 = scalar_select %p1197, %s1194, 7
      %s1199 = smul.addr %s1196, 8
      %s1200 = sadd.s32 %s1198, %s1199
      %s1201 = smul.addr %s1200, 8
      %s1202 = scalar_lea.vmem %s6, %s1201
      // Predicated region
      $region45: #{tpu_custom_call.1} parent=43 // pred_check
        %p1203 = pneg %p196
      $region46: #{tpu_custom_call.1} parent=43 // pred_check_branch
        %1205 = sbr.rel (%p1203) target = $region48
      $region47: #{tpu_custom_call.1} parent=43 // pred_region
        %s1206 = smul.u32 8, %s22
      $region48: #{tpu_custom_call.1} parent=43 // pred_fallthru
        _
    $region44: #{tpu_custom_call.1} parent=5 // pred_fallthru
      _
    %p1207 = scmp.le.s32.totalorder 2, %s12
    // Predicated region
    $region49: #{tpu_custom_call.1} parent=5 // pred_check
      %p1208 = pneg %p1207
    $region50: #{tpu_custom_call.1} parent=5 // pred_check_branch
      %1210 = sbr.rel (%p1208) target = $region52
    $region51: #{tpu_custom_call.1} parent=5 // pred_region
      %s1211 = ssub.s32 %s12, 2
      // Predicated region
      $region53: #{tpu_custom_call.1} parent=51 // pred_check
        %p1212 = pneg %p202
      $region54: #{tpu_custom_call.1} parent=51 // pred_check_branch
        %1214 = sbr.rel (%p1212) target = $region56
      $region55: #{tpu_custom_call.1} parent=51 // pred_region
        %s1215 = smul.u32 8, %s24
        %p1216 = scmp.lt.s32.totalorder %s23, 1
        %s1217 = scalar_select %p1216, %s23, 1
        %p1218 = scmp.lt.s32.totalorder %s1215, 7
        %s1219 = scalar_select %p1218, %s1215, 7
        %s1220 = smul.addr %s1217, 8
        %s1221 = sadd.s32 %s1219, %s1220
        %s1222 = smul.addr %s1221, 8
        %s1223 = scalar_lea.vmem %s6, %s1222
      $region56: #{tpu_custom_call.1} parent=51 // pred_fallthru
        _
    $region52: #{tpu_custom_call.1} parent=5 // pred_fallthru
      _
  $region6: #{tpu_custom_call.1} parent=0 // loop_footer
    %s16 = sadd.s32 1, %s12
  $region7: #{tpu_custom_call.1} parent=0 // loop_footer_branch
    %11 = sbr.rel target = $region3
  $region8: #{tpu_custom_call.1} parent=0 // loop_exit
    _

</llo_original>
